<compile_context>
chip_gen: v5e
topology: v5e:2x2
jax: 0.10.0
libtpu: 0.0.40
codegen_flags: <defaults>
</compile_context>

<pallas_src>
import functools

import jax
import jax.numpy as jnp
from jax import lax
from jax.experimental import pallas as pl
from jax.experimental.pallas import tpu as pltpu


# Per-input-tile VMEM budget. BlockSpec double-buffers the input (~2x this);
# 8 MiB * 2 + a tiny f32 scratch stays well inside the 32 MiB scoped-VMEM
# limit requested below, which itself leaves headroom on every chip
# (v5e/v6e: 128 MiB physical VMEM, v7x: 64 MiB per TensorCore).
_TILE_BYTE_BUDGET = 8 * 1024 * 1024
_VMEM_LIMIT_BYTES = 32 * 1024 * 1024


def _mean_two_dim_kernel(x_ref, o_ref, acc_ref, *, true_m, tile_m, inv_denom, ragged_m):
    """Grid = (num_B_tiles, num_M_tiles); the reduction (M) axis is innermost.

    x_ref  : (TB, TM, N) input tile (original dtype, cast per tile)
    o_ref  : (TB, 1)     f32 output block, written once in the epilogue
    acc_ref: (TB, N)     f32 running sum, resident across the M grid axis
    """
    j = pl.program_id(1)

    @pl.when(j == 0)
    def _init():
        acc_ref[...] = jnp.zeros_like(acc_ref)

    # DMA traffic stays in the input dtype (e.g. bf16); accumulate in f32.
    x = x_ref[...].astype(jnp.float32)                          # (TB, TM, N)

    if ragged_m:
        # Zero the rows past the true M extent in the ragged last tile so the
        # running sum stays unbiased (the divisor below is the true M*N).
        rows_left = true_m - j * tile_m
        row_ids = lax.broadcasted_iota(jnp.int32, (x.shape[1], x.shape[2]), 0)
        x = jnp.where((row_ids < rows_left)[None, :, :], x, 0.0)

    # Accumulate over the sublane/M axis (mostly VALU adds between vregs),
    # keeping the running intermediate lane-dense (width N). The lane/XLU
    # reduction happens exactly once per output tile, in the epilogue below.
    acc_ref[...] += jnp.sum(x, axis=1)                          # (TB, N)

    @pl.when(j == pl.num_programs(1) - 1)
    def _finalize():
        # Single lane reduction + single (masked, tiny) store per output tile.
        total = jnp.sum(acc_ref[...], axis=-1, keepdims=True)   # (TB, 1)
        o_ref[...] = total * inv_denom


def simple_mean_two_dim(x, *, tile_m=None):
    """Pallas equivalent of torch.mean(x, dim=[1, 2]) for a 3-D input.

    `tile_m` optionally overrides the auto-sized M tile (useful for testing the
    multi-step / ragged accumulation path on small inputs).
    """
    assert x.ndim == 3, x.shape
    B, M, N = x.shape
    itemsize = jnp.dtype(x.dtype).itemsize

    # ---- tile sizing --------------------------------------------------------
    TB = min(B, 128)
    nb = pl.cdiv(B, TB)

    if tile_m is None:
        row_bytes = TB * N * itemsize                 # bytes per unit of TM in a tile
        tile_m = max(8, _TILE_BYTE_BUDGET // max(1, row_bytes))
    if tile_m >= M or M < 8:
        TM = M                                        # full-extent block: always legal
    else:
        TM = max(8, (tile_m // 8) * 8)                # sublane block dim: multiple of 8
    nm = pl.cdiv(M, TM)
    ragged_m = (M % TM) != 0

    inv_denom = 1.0 / float(M * N)                    # true divisor, not the tile shape

    kernel = functools.partial(
        _mean_two_dim_kernel,
        true_m=M, tile_m=TM, inv_denom=inv_denom, ragged_m=ragged_m,
    )

    out2d = pl.pallas_call(
        kernel,
        out_shape=jax.ShapeDtypeStruct((nb * TB, 1), jnp.float32),
        grid_spec=pltpu.PrefetchScalarGridSpec(
            num_scalar_prefetch=0,
            grid=(nb, nm),                            # reduction axis (M) innermost
            in_specs=[pl.BlockSpec((TB, TM, N), lambda i, j: (i, j, 0))],
            out_specs=pl.BlockSpec((TB, 1), lambda i, j: (i, 0)),
            scratch_shapes=[pltpu.VMEM((TB, N), jnp.float32)],
        ),
        compiler_params=pltpu.CompilerParams(
            # B axis independent -> megacore sharding on v7x; M axis is a reduction.
            dimension_semantics=("parallel", "arbitrary"),
            vmem_limit_bytes=_VMEM_LIMIT_BYTES,
        ),
        cost_estimate=pl.CostEstimate(
            flops=B * M * N,
            transcendentals=0,
            bytes_accessed=B * M * N * itemsize + B * 4,
        ),
    )(x)

    return out2d[:B, 0].astype(x.dtype)


if __name__ == "__main__":
    key = jax.random.PRNGKey(0)
    k1, k2, k3 = jax.random.split(key, 3)

    # 1) The module's own example shape (5, 5, 5): full-extent blocks, grid (1, 1).
    x_small = jax.random.normal(k1, (5, 5, 5), dtype=jnp.float32)
    z_small = jax.block_until_ready(simple_mean_two_dim(x_small))
    ref_small = jnp.mean(x_small, axis=(1, 2))
    assert z_small.shape == (5,), z_small.shape
    assert jnp.allclose(z_small, ref_small, atol=1e-5, rtol=1e-5)

    # 2) Small f32 input with a forced tile_m to exercise the multi-step /
    #    ragged-M accumulation path (TM=16 over M=40 -> grid (1, 3), last tile masked).
    x_f32 = jax.random.normal(k2, (4, 40, 128), dtype=jnp.float32)
    z_f32 = jax.block_until_ready(simple_mean_two_dim(x_f32, tile_m=16))
    ref_f32 = jnp.mean(x_f32, axis=(1, 2))
    assert z_f32.shape == (4,), z_f32.shape
    assert jnp.allclose(z_f32, ref_f32, atol=1e-5, rtol=1e-5)

    # 3) Small bf16 input: DMA stays bf16, f32 accumulation inside the kernel.
    x_bf16 = jax.random.normal(k3, (8, 32, 256), dtype=jnp.bfloat16)
    z_bf16 = jax.block_until_ready(simple_mean_two_dim(x_bf16, tile_m=8))
    ref_bf16 = jnp.mean(x_bf16.astype(jnp.float32), axis=(1, 2))
    assert z_bf16.shape == (8,), z_bf16.shape
    assert jnp.allclose(z_bf16.astype(jnp.float32), ref_bf16, atol=1e-3, rtol=1e-2)

    print("KERNEL_OK")
</pallas_src>

<mosaic_0001>
module attributes {stable_mosaic.version = 11 : i64} {
  func.func @_mean_two_dim_kernel(%arg0: i32, %arg1: i32, %arg2: memref<5x5x5xf32, #tpu.memory_space<vmem>>, %arg3: memref<5x1xf32, #tpu.memory_space<vmem>>, %arg4: memref<5x5xf32, #tpu.memory_space<vmem>>) attributes {dimension_semantics = [#tpu.dimension_semantics<parallel>, #tpu.dimension_semantics<arbitrary>], iteration_bounds = array<i64: 1, 1>, scalar_prefetch = 0 : i64, scratch_operands = 1 : i64, tpu.core_type = #tpu.core_type<tc>, window_params = [{transform_indices = @transform_0, window_bounds = array<i64: 5, 5, 5>}, {transform_indices = @transform_1, window_bounds = array<i64: 5, 1>}]} {
    %c0_i32 = arith.constant 0 : i32
    %0 = arith.cmpi eq, %arg1, %c0_i32 : i32
    %1 = arith.extui %0 : i1 to i32
    %c0_i32_0 = arith.constant 0 : i32
    %2 = arith.cmpi ne, %1, %c0_i32_0 : i32
    scf.if %2 {
      %cst_9 = arith.constant 0.000000e+00 : f32
      %11 = vector.broadcast %cst_9 : f32 to vector<5x5xf32>
      %c0_10 = arith.constant 0 : index
      %c0_11 = arith.constant 0 : index
      %12 = vector.load %arg4[%c0_10, %c0_11] : memref<5x5xf32, #tpu.memory_space<vmem>>, vector<5x5xf32>
      tpu.vector_store %arg4[%c0_10, %c0_11], %11 {strides = array<i32>} : memref<5x5xf32, #tpu.memory_space<vmem>>, vector<5x5xf32>,
    } else {
    }
    %c0 = arith.constant 0 : index
    %c0_1 = arith.constant 0 : index
    %c0_2 = arith.constant 0 : index
    %3 = vector.load %arg2[%c0, %c0_1, %c0_2] : memref<5x5x5xf32, #tpu.memory_space<vmem>>, vector<5x5x5xf32>
    %c0_3 = arith.constant 0 : index
    %c0_4 = arith.constant 0 : index
    %4 = vector.load %arg4[%c0_3, %c0_4] : memref<5x5xf32, #tpu.memory_space<vmem>>, vector<5x5xf32>
    %cst = arith.constant dense<0.000000e+00> : vector<5x5xf32>
    %5 = vector.multi_reduction <add>, %3, %cst [1] : vector<5x5x5xf32> to vector<5x5xf32>
    %6 = arith.addf %4, %5 : vector<5x5xf32>
    %c0_5 = arith.constant 0 : index
    %c0_6 = arith.constant 0 : index
    %7 = vector.load %arg4[%c0_5, %c0_6] : memref<5x5xf32, #tpu.memory_space<vmem>>, vector<5x5xf32>
    tpu.vector_store %arg4[%c0_5, %c0_6], %6 {strides = array<i32>} : memref<5x5xf32, #tpu.memory_space<vmem>>, vector<5x5xf32>,
    %c0_i32_7 = arith.constant 0 : i32
    %8 = arith.cmpi eq, %arg1, %c0_i32_7 : i32
    %9 = arith.extui %8 : i1 to i32
    %c0_i32_8 = arith.constant 0 : i32
    %10 = arith.cmpi ne, %9, %c0_i32_8 : i32
    scf.if %10 {
      %c0_9 = arith.constant 0 : index
      %c0_10 = arith.constant 0 : index
      %11 = vector.load %arg4[%c0_9, %c0_10] : memref<5x5xf32, #tpu.memory_space<vmem>>, vector<5x5xf32>
      %cst_11 = arith.constant dense<0.000000e+00> : vector<5xf32>
      %12 = vector.multi_reduction <add>, %11, %cst_11 [1] : vector<5x5xf32> to vector<5xf32>
      %13 = vector.shape_cast %12 : vector<5xf32> to vector<5x1xf32>
      %cst_12 = arith.constant 4.000000e-02 : f32
      %14 = vector.broadcast %cst_12 : f32 to vector<5x1xf32>
      %15 = arith.mulf %13, %14 : vector<5x1xf32>
      %c0_13 = arith.constant 0 : index
      %c0_14 = arith.constant 0 : index
      %16 = vector.load %arg3[%c0_13, %c0_14] : memref<5x1xf32, #tpu.memory_space<vmem>>, vector<5x1xf32>
      tpu.vector_store %arg3[%c0_13, %c0_14], %15 {strides = array<i32>} : memref<5x1xf32, #tpu.memory_space<vmem>>, vector<5x1xf32>,
    } else {
    }
    return
  }
  func.func @transform_0(%arg0: i32, %arg1: i32) -> (i32, i32, i32) {
    %c0_i32 = arith.constant 0 : i32
    %c0_i32_0 = arith.constant 0 : i32
    return %arg0, %arg1, %c0_i32 : i32, i32, i32
  }
  func.func @transform_1(%arg0: i32, %arg1: i32) -> (i32, i32) {
    %c0_i32 = arith.constant 0 : i32
    %c0_i32_0 = arith.constant 0 : i32
    return %arg0, %c0_i32 : i32, i32
  }
}

</mosaic_0001>

<llo_original>
// kernel: tpu_custom_call.1
$region0: #{tpu_custom_call.1}
  #allocation0 [shape = 'u32[]', space=smem, size = 0x4, offset = 0x4, fixed_abs, tag = 'smem constant byte address 0x4 - core index']
  #allocation1 [shape = 'u32[72,128]{1,0:T(1,128)}', space=vmem, size = 0x9000, scoped, tag = 'internal scratch']
  #allocation2 [shape = 'f32[5,5]{1,0:T(8,128)}', space=vmem, size = 0x1000, scoped, tag = 'scratch operand']
  %s0 = inlined_call_operand.hbm [shape: f32[5,5,5], index: 0, kind: input, shape index: {}]
  %s1 = inlined_call_operand.vmem [shape: f32[5,1], index: 1, kind: output, shape index: {}]
  %s2 = sld [smem:[#allocation0]]
  $region26: #{tpu_custom_call.1} parent=0
    _
  %s4 = ssub.s32 1, %s2
  %s5 = scalar_select 0, %s4, %s2
  $region1: #{tpu_custom_call.1} parent=0
    #allocation3 [shape = 'u8[20480]{0}', space=vmem, size = 0x5000, scoped, tag = 'input window, operand 0, single buffered']
    #allocation4 [shape = 's32[1]{0}', space=sflag, size = 0x4, scoped, tag = 'scoped memory for tpu_custom_call.1']
    %6 = vsyncpa [#allocation4], 0
    // Predicated region
    $region2: #{tpu_custom_call.1} parent=1 // pred_check
      _
    $region3: #{tpu_custom_call.1} parent=1 // pred_check_branch
      %8 = sbr.rel (0) target = $region5
    $region4: #{tpu_custom_call.1} parent=1 // pred_region
      %10 = vsyncadd [#allocation4], 0
      %s11 = sshll.u32 %s0, 4
      %s12 = int_to_ptr.hbm [resolvable:$true] %s11
      %s13 = sshll.u32 [#allocation3], 4
      %s14 = int_to_ptr.vmem [resolvable:$true] %s13
      %19 = dma.hbm_to_vmem [thread:$0]  %s12, 640, %s14, [#allocation4], 128, 128, 8
    $region5: #{tpu_custom_call.1} parent=1 // pred_fallthru
      _
    // Predicated region
    $region6: #{tpu_custom_call.1} parent=1 // pred_check
      _
    $region7: #{tpu_custom_call.1} parent=1 // pred_check_branch
      %21 = sbr.rel (0) target = $region9
    $region8: #{tpu_custom_call.1} parent=1 // pred_region
      %23 = dma.done [#allocation4], 640
    $region9: #{tpu_custom_call.1} parent=1 // pred_fallthru
      _
    %p24 = scmp.eq.s32.totalorder 0, 0
    // Predicated region
    $region10: #{tpu_custom_call.1} parent=1 // pred_check
      %p25 = pneg %p24
    $region11: #{tpu_custom_call.1} parent=1 // pred_check_branch
      %27 = sbr.rel (%p25) target = $region13
    $region12: #{tpu_custom_call.1} parent=1 // pred_region
      %vm28 = vcmask 36864
      %29 = vst.msk [vmem:[#allocation2] sm:$0x1f] %vm28, 0.0
    $region13: #{tpu_custom_call.1} parent=1 // pred_fallthru
      _
    %v30 = vld [vmem:[#allocation3] sm:$0x1f]
    %v31 = vld [vmem:[#allocation3 + $0x8] sm:$0x1f]
    %v32 = vld [vmem:[#allocation3 + $0x10] sm:$0x1f]
    %v33 = vld [vmem:[#allocation3 + $0x18] sm:$0x1f]
    %v34 = vld [vmem:[#allocation3 + $0x20] sm:$0x1f]
    %v35 = vld [vmem:[#allocation2] sm:$0x1f]
    %vm36 = vcmask 36864
    %v37 = vsel %vm36, %v30, 0.0
    %v38 = vrot.slane %v37, 4
    %v39 = vadd.f32 %v37, %v38
    %v40 = vrot.slane %v39, 2
    %v41 = vadd.f32 %v39, %v40
    %v42 = vrot.slane %v41, 1
    %v43 = vadd.f32 %v41, %v42
    %v44 = vsel %vm36, %v31, 0.0
    %v45 = vrot.slane %v44, 4
    %v46 = vadd.f32 %v44, %v45
    %v47 = vrot.slane %v46, 2
    %v48 = vadd.f32 %v46, %v47
    %v49 = vrot.slane %v48, 1
    %v50 = vadd.f32 %v48, %v49
    %v51 = vsel %vm36, %v32, 0.0
    %v52 = vrot.slane %v51, 4
    %v53 = vadd.f32 %v51, %v52
    %v54 = vrot.slane %v53, 2
    %v55 = vadd.f32 %v53, %v54
    %v56 = vrot.slane %v55, 1
    %v57 = vadd.f32 %v55, %v56
    %v58 = vsel %vm36, %v33, 0.0
    %v59 = vrot.slane %v58, 4
    %v60 = vadd.f32 %v58, %v59
    %v61 = vrot.slane %v60, 2
    %v62 = vadd.f32 %v60, %v61
    %v63 = vrot.slane %v62, 1
    %v64 = vadd.f32 %v62, %v63
    %v65 = vsel %vm36, %v34, 0.0
    %v66 = vrot.slane %v65, 4
    %v67 = vadd.f32 %v65, %v66
    %v68 = vrot.slane %v67, 2
    %v69 = vadd.f32 %v67, %v68
    %v70 = vrot.slane %v69, 1
    %v71 = vadd.f32 %v69, %v70
    %vm77 = vcmask 1041409
    %v78 = vsel %vm77, %v50, %v43
    %vm79 = vcmask 1042434
    %v80 = vsel %vm79, %v57, %v78
    %vm81 = vcmask 1043459
    %v82 = vsel %vm81, %v64, %v80
    %vm83 = vcmask 1044484
    %v84 = vsel %vm83, %v71, %v82
    %v86 = vadd.f32 %v35, %v84
    %87 = vst.msk [vmem:[#allocation2] sm:$0x1f] %vm36, %v86
    // Predicated region
    $region14: #{tpu_custom_call.1} parent=1 // pred_check
      %p88 = pneg %p24
    $region15: #{tpu_custom_call.1} parent=1 // pred_check_branch
      %90 = sbr.rel (%p88) target = $region17
    $region16: #{tpu_custom_call.1} parent=1 // pred_region
      %v91 = vld [vmem:[#allocation2] sm:$0x1f]
      %v92 = vsel %vm36, %v91, 0.0
      %93 = vadd.xlane.f32.xlu0 %v92
      %v94 = vpop.xlane.xlu0 %93
      %v95 = vmul.f32 %v94, 0.04
      %vm96 = vcmask 4096
      %97 = vst.msk [vmem:[%s1] sm:$0x1f] %vm96, %v95
    $region17: #{tpu_custom_call.1} parent=1 // pred_fallthru
      _
    // Predicated region
    $region18: #{tpu_custom_call.1} parent=1 // pred_check
      _
    $region19: #{tpu_custom_call.1} parent=1 // pred_check_branch
      %99 = sbr.rel (0) target = $region21
    $region20: #{tpu_custom_call.1} parent=1 // pred_region
      _
    $region21: #{tpu_custom_call.1} parent=1 // pred_fallthru
      _
    // Predicated region
    $region22: #{tpu_custom_call.1} parent=1 // pred_check
      _
    $region23: #{tpu_custom_call.1} parent=1 // pred_check_branch
      %101 = sbr.rel (0) target = $region25
    $region24: #{tpu_custom_call.1} parent=1 // pred_region
      _
    $region25: #{tpu_custom_call.1} parent=1 // pred_fallthru
      _
    %102 = vsyncpa [#allocation4], 1

</llo_original>
